<compile_context>
chip_gen: v6e
topology: v6e:2x2x1
jax: 0.10.0
libtpu: 0.0.40
codegen_flags: <defaults>
</compile_context>

<pallas_src>
import functools

import jax
import jax.numpy as jnp
from jax.experimental import pallas as pl
from jax.experimental.pallas import tpu as pltpu


NUM_TIME_STEPS = 1000


def _gather_kernel(t_ref, tab_ref, beta_out_ref, alpha_out_ref, *,
                   num_time_steps: int, batch: int):
    # t_ref:         (B,)    int32   SMEM   timestep indices (pre-clamped)
    # tab_ref:       (2*T,)  float32 SMEM   [beta[0:T] | alpha[0:T]]
    # beta_out_ref:  (B,)    float32 SMEM   beta[t]
    # alpha_out_ref: (B,)    float32 SMEM   alpha[t]
    def body(i, carry):
        ti = t_ref[i]                                     # scalar SMEM load
        beta_out_ref[i] = tab_ref[ti]                     # beta[t_i]
        alpha_out_ref[i] = tab_ref[num_time_steps + ti]   # alpha[t_i]
        return carry

    # Pure scalar-unit work: 3 scalar loads + 2 scalar stores per element.
    # Full unroll for small B, partial unroll (8) for large B.
    unroll = True if batch <= 64 else 8
    jax.lax.fori_loop(0, batch, body, 0, unroll=unroll)


def _ddpm_forward(t, table, *, num_time_steps: int):
    """Jitted wrapper body: clip + reshape + pallas gather + reshape back."""
    orig_shape = t.shape
    t1d = jnp.clip(t.astype(jnp.int32).reshape(-1), 0, num_time_steps - 1)
    b = t1d.shape[0]

    if b == 0:  # static under jit — degenerate empty batch, skip pallas_call
        z = jnp.zeros(orig_shape, jnp.float32)
        return z, z

    beta_t, alpha_t = pl.pallas_call(
        functools.partial(
            _gather_kernel,
            num_time_steps=num_time_steps,
            batch=b,
        ),
        out_shape=(
            jax.ShapeDtypeStruct((b,), jnp.float32),
            jax.ShapeDtypeStruct((b,), jnp.float32),
        ),
        in_specs=[
            pl.BlockSpec(memory_space=pltpu.MemorySpace.SMEM),  # t
            pl.BlockSpec(memory_space=pltpu.MemorySpace.SMEM),  # table
        ],
        out_specs=(
            pl.BlockSpec(memory_space=pltpu.MemorySpace.SMEM),  # beta_t
            pl.BlockSpec(memory_space=pltpu.MemorySpace.SMEM),  # alpha_t
        ),
    )(t1d, table)

    return beta_t.reshape(orig_shape), alpha_t.reshape(orig_shape)


class DDPMSchedulerPallas:
    """JAX/Pallas port of DDPM_Scheduler (forward = table gather)."""

    def __init__(self, num_time_steps: int = NUM_TIME_STEPS):
        # Parameter setup (plain JAX glue) — matches torch.linspace/cumprod.
        beta = jnp.linspace(0.0001, 0.02, num_time_steps, dtype=jnp.float32)
        alpha = jnp.cumprod(1.0 - beta, axis=0)
        # Single combined lookup table: beta rows then alpha rows, flat 1-D
        # (1-D SMEM avoids the 2-D SMEM (8,128)-word padding blowup).
        self.table = jnp.concatenate([beta, alpha]).astype(jnp.float32)  # (2*T,)
        self.num_time_steps = num_time_steps
        # Jit the whole wrapper so clip/reshape/pallas_call/reshape are one
        # dispatch.  Recompiles per distinct t-shape, which is expected.
        self._fn = jax.jit(
            functools.partial(_ddpm_forward, num_time_steps=num_time_steps)
        )

    def __call__(self, t: jax.Array):
        return self._fn(jnp.asarray(t), self.table)


if __name__ == "__main__":
    key = jax.random.PRNGKey(0)
    batch = 8
    # Deterministic example timesteps in [0, NUM_TIME_STEPS).
    t = jax.random.randint(key, (batch,), 0, NUM_TIME_STEPS, dtype=jnp.int32)

    sched = DDPMSchedulerPallas(NUM_TIME_STEPS)
    beta_t, alpha_t = sched(t)
    beta_t = jax.block_until_ready(beta_t)
    alpha_t = jax.block_until_ready(alpha_t)

    # Reference (plain JAX) check of the gather semantics.
    beta_ref = jnp.linspace(0.0001, 0.02, NUM_TIME_STEPS, dtype=jnp.float32)
    alpha_ref = jnp.cumprod(1.0 - beta_ref, axis=0)
    assert jnp.allclose(beta_t, beta_ref[t], atol=1e-7)
    assert jnp.allclose(alpha_t, alpha_ref[t], atol=1e-7)
    assert beta_t.shape == t.shape and alpha_t.shape == t.shape
    assert beta_t.dtype == jnp.float32 and alpha_t.dtype == jnp.float32

    print("KERNEL_OK")
</pallas_src>

<mosaic_0001>
module attributes {stable_mosaic.version = 11 : i64} {
  func.func @_gather_kernel(%arg0: memref<8xi32, #tpu.memory_space<smem>>, %arg1: memref<2000xf32, #tpu.memory_space<smem>>, %arg2: memref<8xf32, #tpu.memory_space<smem>>, %arg3: memref<8xf32, #tpu.memory_space<smem>>) attributes {dimension_semantics = [], scalar_prefetch = 0 : i64, scratch_operands = 0 : i64, tpu.core_type = #tpu.core_type<tc>} {
    %c0_i32 = arith.constant 0 : i32
    %0 = arith.index_cast %c0_i32 : i32 to index
    %1 = memref.load %arg0[%0] : memref<8xi32, #tpu.memory_space<smem>>
    %2 = arith.index_cast %1 : i32 to index
    %3 = memref.load %arg1[%2] : memref<2000xf32, #tpu.memory_space<smem>>
    %4 = arith.index_cast %c0_i32 : i32 to index
    %5 = memref.load %arg2[%4] : memref<8xf32, #tpu.memory_space<smem>>
    memref.store %3, %arg2[%4] : memref<8xf32, #tpu.memory_space<smem>>
    %c1000_i32 = arith.constant 1000 : i32
    %6 = arith.addi %c1000_i32, %1 : i32
    %7 = arith.index_cast %6 : i32 to index
    %8 = memref.load %arg1[%7] : memref<2000xf32, #tpu.memory_space<smem>>
    %9 = arith.index_cast %c0_i32 : i32 to index
    %10 = memref.load %arg3[%9] : memref<8xf32, #tpu.memory_space<smem>>
    memref.store %8, %arg3[%9] : memref<8xf32, #tpu.memory_space<smem>>
    %c1_i32 = arith.constant 1 : i32
    %11 = arith.index_cast %c1_i32 : i32 to index
    %12 = memref.load %arg0[%11] : memref<8xi32, #tpu.memory_space<smem>>
    %13 = arith.index_cast %12 : i32 to index
    %14 = memref.load %arg1[%13] : memref<2000xf32, #tpu.memory_space<smem>>
    %15 = arith.index_cast %c1_i32 : i32 to index
    %16 = memref.load %arg2[%15] : memref<8xf32, #tpu.memory_space<smem>>
    memref.store %14, %arg2[%15] : memref<8xf32, #tpu.memory_space<smem>>
    %c1000_i32_0 = arith.constant 1000 : i32
    %17 = arith.addi %c1000_i32_0, %12 : i32
    %18 = arith.index_cast %17 : i32 to index
    %19 = memref.load %arg1[%18] : memref<2000xf32, #tpu.memory_space<smem>>
    %20 = arith.index_cast %c1_i32 : i32 to index
    %21 = memref.load %arg3[%20] : memref<8xf32, #tpu.memory_space<smem>>
    memref.store %19, %arg3[%20] : memref<8xf32, #tpu.memory_space<smem>>
    %c2_i32 = arith.constant 2 : i32
    %22 = arith.index_cast %c2_i32 : i32 to index
    %23 = memref.load %arg0[%22] : memref<8xi32, #tpu.memory_space<smem>>
    %24 = arith.index_cast %23 : i32 to index
    %25 = memref.load %arg1[%24] : memref<2000xf32, #tpu.memory_space<smem>>
    %26 = arith.index_cast %c2_i32 : i32 to index
    %27 = memref.load %arg2[%26] : memref<8xf32, #tpu.memory_space<smem>>
    memref.store %25, %arg2[%26] : memref<8xf32, #tpu.memory_space<smem>>
    %c1000_i32_1 = arith.constant 1000 : i32
    %28 = arith.addi %c1000_i32_1, %23 : i32
    %29 = arith.index_cast %28 : i32 to index
    %30 = memref.load %arg1[%29] : memref<2000xf32, #tpu.memory_space<smem>>
    %31 = arith.index_cast %c2_i32 : i32 to index
    %32 = memref.load %arg3[%31] : memref<8xf32, #tpu.memory_space<smem>>
    memref.store %30, %arg3[%31] : memref<8xf32, #tpu.memory_space<smem>>
    %c3_i32 = arith.constant 3 : i32
    %33 = arith.index_cast %c3_i32 : i32 to index
    %34 = memref.load %arg0[%33] : memref<8xi32, #tpu.memory_space<smem>>
    %35 = arith.index_cast %34 : i32 to index
    %36 = memref.load %arg1[%35] : memref<2000xf32, #tpu.memory_space<smem>>
    %37 = arith.index_cast %c3_i32 : i32 to index
    %38 = memref.load %arg2[%37] : memref<8xf32, #tpu.memory_space<smem>>
    memref.store %36, %arg2[%37] : memref<8xf32, #tpu.memory_space<smem>>
    %c1000_i32_2 = arith.constant 1000 : i32
    %39 = arith.addi %c1000_i32_2, %34 : i32
    %40 = arith.index_cast %39 : i32 to index
    %41 = memref.load %arg1[%40] : memref<2000xf32, #tpu.memory_space<smem>>
    %42 = arith.index_cast %c3_i32 : i32 to index
    %43 = memref.load %arg3[%42] : memref<8xf32, #tpu.memory_space<smem>>
    memref.store %41, %arg3[%42] : memref<8xf32, #tpu.memory_space<smem>>
    %c4_i32 = arith.constant 4 : i32
    %44 = arith.index_cast %c4_i32 : i32 to index
    %45 = memref.load %arg0[%44] : memref<8xi32, #tpu.memory_space<smem>>
    %46 = arith.index_cast %45 : i32 to index
    %47 = memref.load %arg1[%46] : memref<2000xf32, #tpu.memory_space<smem>>
    %48 = arith.index_cast %c4_i32 : i32 to index
    %49 = memref.load %arg2[%48] : memref<8xf32, #tpu.memory_space<smem>>
    memref.store %47, %arg2[%48] : memref<8xf32, #tpu.memory_space<smem>>
    %c1000_i32_3 = arith.constant 1000 : i32
    %50 = arith.addi %c1000_i32_3, %45 : i32
    %51 = arith.index_cast %50 : i32 to index
    %52 = memref.load %arg1[%51] : memref<2000xf32, #tpu.memory_space<smem>>
    %53 = arith.index_cast %c4_i32 : i32 to index
    %54 = memref.load %arg3[%53] : memref<8xf32, #tpu.memory_space<smem>>
    memref.store %52, %arg3[%53] : memref<8xf32, #tpu.memory_space<smem>>
    %c5_i32 = arith.constant 5 : i32
    %55 = arith.index_cast %c5_i32 : i32 to index
    %56 = memref.load %arg0[%55] : memref<8xi32, #tpu.memory_space<smem>>
    %57 = arith.index_cast %56 : i32 to index
    %58 = memref.load %arg1[%57] : memref<2000xf32, #tpu.memory_space<smem>>
    %59 = arith.index_cast %c5_i32 : i32 to index
    %60 = memref.load %arg2[%59] : memref<8xf32, #tpu.memory_space<smem>>
    memref.store %58, %arg2[%59] : memref<8xf32, #tpu.memory_space<smem>>
    %c1000_i32_4 = arith.constant 1000 : i32
    %61 = arith.addi %c1000_i32_4, %56 : i32
    %62 = arith.index_cast %61 : i32 to index
    %63 = memref.load %arg1[%62] : memref<2000xf32, #tpu.memory_space<smem>>
    %64 = arith.index_cast %c5_i32 : i32 to index
    %65 = memref.load %arg3[%64] : memref<8xf32, #tpu.memory_space<smem>>
    memref.store %63, %arg3[%64] : memref<8xf32, #tpu.memory_space<smem>>
    %c6_i32 = arith.constant 6 : i32
    %66 = arith.index_cast %c6_i32 : i32 to index
    %67 = memref.load %arg0[%66] : memref<8xi32, #tpu.memory_space<smem>>
    %68 = arith.index_cast %67 : i32 to index
    %69 = memref.load %arg1[%68] : memref<2000xf32, #tpu.memory_space<smem>>
    %70 = arith.index_cast %c6_i32 : i32 to index
    %71 = memref.load %arg2[%70] : memref<8xf32, #tpu.memory_space<smem>>
    memref.store %69, %arg2[%70] : memref<8xf32, #tpu.memory_space<smem>>
    %c1000_i32_5 = arith.constant 1000 : i32
    %72 = arith.addi %c1000_i32_5, %67 : i32
    %73 = arith.index_cast %72 : i32 to index
    %74 = memref.load %arg1[%73] : memref<2000xf32, #tpu.memory_space<smem>>
    %75 = arith.index_cast %c6_i32 : i32 to index
    %76 = memref.load %arg3[%75] : memref<8xf32, #tpu.memory_space<smem>>
    memref.store %74, %arg3[%75] : memref<8xf32, #tpu.memory_space<smem>>
    %c7_i32 = arith.constant 7 : i32
    %77 = arith.index_cast %c7_i32 : i32 to index
    %78 = memref.load %arg0[%77] : memref<8xi32, #tpu.memory_space<smem>>
    %79 = arith.index_cast %78 : i32 to index
    %80 = memref.load %arg1[%79] : memref<2000xf32, #tpu.memory_space<smem>>
    %81 = arith.index_cast %c7_i32 : i32 to index
    %82 = memref.load %arg2[%81] : memref<8xf32, #tpu.memory_space<smem>>
    memref.store %80, %arg2[%81] : memref<8xf32, #tpu.memory_space<smem>>
    %c1000_i32_6 = arith.constant 1000 : i32
    %83 = arith.addi %c1000_i32_6, %78 : i32
    %84 = arith.index_cast %83 : i32 to index
    %85 = memref.load %arg1[%84] : memref<2000xf32, #tpu.memory_space<smem>>
    %86 = arith.index_cast %c7_i32 : i32 to index
    %87 = memref.load %arg3[%86] : memref<8xf32, #tpu.memory_space<smem>>
    memref.store %85, %arg3[%86] : memref<8xf32, #tpu.memory_space<smem>>
    %c8_i32 = arith.constant 8 : i32
    return
  }
}

</mosaic_0001>

<llo_original>
// kernel: _ddpm_forward.1
$region0: #{_ddpm_forward.1}
  #allocation0 [shape = 'u32[]', space=smem, size = 0x4, offset = 0x4, fixed_abs, tag = 'smem constant byte address 0x4 - core index']
  #allocation1 [shape = 'u32[144,128]{1,0:T(1,128)}', space=vmem, size = 0x12000, scoped, tag = 'internal scratch']
  %s0 = inlined_call_operand.vmem [shape: s32[8], index: 0, kind: input, shape index: {}]
  %s1 = inlined_call_operand.hbm [shape: f32[2000], index: 1, kind: input, shape index: {}]
  %s2 = inlined_call_operand.hbm [shape: f32[8], index: 2, kind: output, shape index: {0}]
  %s3 = inlined_call_operand.hbm [shape: f32[8], index: 3, kind: output, shape index: {1}]
  %4 = xla_tuple %s2, %s3
  %s5 = sld [smem:[#allocation0]]
  $region34: #{_ddpm_forward.1} parent=0
    _
  %s7 = ssub.s32 1, %s5
  %s8 = scalar_select 0, %s7, %s5
  $region1: #{_ddpm_forward.1} parent=0
    #allocation2 [shape = 'u8[512]{0}', space=smem, size = 0x200, scoped, tag = 'input window, operand 0, single buffered']
    #allocation3 [shape = 's32[1]{0}', space=sflag, size = 0x4, scoped, tag = 'scoped memory for _ddpm_forward.1']
    #allocation4 [shape = 's32[1]{0}', space=sflag, size = 0x4, scoped, tag = 'scoped memory for _ddpm_forward.1']
    #allocation5 [shape = 's32[1]{0}', space=sflag, size = 0x4, scoped, tag = 'scoped memory for _ddpm_forward.1']
    #allocation6 [shape = 'u8[8192]{0}', space=smem, size = 0x2000, scoped, tag = 'input window, operand 1, single buffered']
    #allocation7 [shape = 'u8[512]{0}', space=smem, size = 0x200, scoped, tag = 'output window, operand 0, single buffered']
    #allocation8 [shape = 'u8[512]{0}', space=smem, size = 0x200, scoped, tag = 'output window, operand 1, single buffered']
    #allocation9 [shape = 's32[1]{0}', space=sflag, size = 0x4, scoped, tag = 'scoped memory for _ddpm_forward.1']
    %9 = vsyncpa [#allocation5], 0
    %10 = vsyncpa [#allocation3], 0
    %11 = vsyncpa [#allocation4], 0
    %12 = vsyncpa [#allocation9], 0
    // Predicated region
    $region2: #{_ddpm_forward.1} parent=1 // pred_check
      _
    $region3: #{_ddpm_forward.1} parent=1 // pred_check_branch
      %14 = sbr.rel (0) target = $region5
    $region4: #{_ddpm_forward.1} parent=1 // pred_region
      %s16 = ssub.s32 16, 16
      %17 = vsyncadd [#allocation5], %s16
      %s19 = sshll.u32 %s0, 4
      %s20 = int_to_ptr.vmem [resolvable:$true] %s19
      %22 = dma.vmem_to_smem %s20, 16, [#allocation2], [#allocation5]
    $region5: #{_ddpm_forward.1} parent=1 // pred_fallthru
      _
    // Predicated region
    $region6: #{_ddpm_forward.1} parent=1 // pred_check
      _
    $region7: #{_ddpm_forward.1} parent=1 // pred_check_branch
      %24 = sbr.rel (0) target = $region9
    $region8: #{_ddpm_forward.1} parent=1 // pred_region
      %s26 = ssub.s32 256, 256
      %27 = vsyncadd [#allocation3], %s26
      %30 = dma.hbm_to_smem %s1, 256, [#allocation6], [#allocation3]
    $region9: #{_ddpm_forward.1} parent=1 // pred_fallthru
      _
    // Predicated region
    $region10: #{_ddpm_forward.1} parent=1 // pred_check
      _
    $region11: #{_ddpm_forward.1} parent=1 // pred_check_branch
      %32 = sbr.rel (0) target = $region13
    $region12: #{_ddpm_forward.1} parent=1 // pred_region
      %33 = dma.done [#allocation5], 16
    $region13: #{_ddpm_forward.1} parent=1 // pred_fallthru
      _
    // Predicated region
    $region14: #{_ddpm_forward.1} parent=1 // pred_check
      _
    $region15: #{_ddpm_forward.1} parent=1 // pred_check_branch
      %35 = sbr.rel (0) target = $region17
    $region16: #{_ddpm_forward.1} parent=1 // pred_region
      %36 = dma.done [#allocation3], 256
    $region17: #{_ddpm_forward.1} parent=1 // pred_fallthru
      _
    %37 = sfence
    %s38 = sld [smem:[#allocation2]]
    %s39 = sld [smem:[#allocation6 + %s38]]
    %s40 = scalar_lea.smem [#allocation7], 0
    %41 = sst [smem:[%s40]] %s39
    %s42 = sadd.s32 %s38, 1000
    %s43 = sld [smem:[#allocation6 + %s42]]
    %s44 = scalar_lea.smem [#allocation8], 0
    %45 = sst [smem:[%s44]] %s43
    %s46 = sld [smem:[#allocation2 + $0x1]]
    %s47 = sld [smem:[#allocation6 + %s46]]
    %s48 = scalar_lea.smem [#allocation7], 1
    %49 = sst [smem:[%s48]] %s47
    %s50 = sadd.s32 %s46, 1000
    %s51 = sld [smem:[#allocation6 + %s50]]
    %s52 = scalar_lea.smem [#allocation8], 1
    %53 = sst [smem:[%s52]] %s51
    %s54 = sld [smem:[#allocation2 + $0x2]]
    %s55 = sld [smem:[#allocation6 + %s54]]
    %s56 = scalar_lea.smem [#allocation7], 2
    %57 = sst [smem:[%s56]] %s55
    %s58 = sadd.s32 %s54, 1000
    %s59 = sld [smem:[#allocation6 + %s58]]
    %s60 = scalar_lea.smem [#allocation8], 2
    %61 = sst [smem:[%s60]] %s59
    %s62 = sld [smem:[#allocation2 + $0x3]]
    %s63 = sld [smem:[#allocation6 + %s62]]
    %s64 = scalar_lea.smem [#allocation7], 3
    %65 = sst [smem:[%s64]] %s63
    %s66 = sadd.s32 %s62, 1000
    %s67 = sld [smem:[#allocation6 + %s66]]
    %s68 = scalar_lea.smem [#allocation8], 3
    %69 = sst [smem:[%s68]] %s67
    %s70 = sld [smem:[#allocation2 + $0x4]]
    %s71 = sld [smem:[#allocation6 + %s70]]
    %s72 = scalar_lea.smem [#allocation7], 4
    %73 = sst [smem:[%s72]] %s71
    %s74 = sadd.s32 %s70, 1000
    %s75 = sld [smem:[#allocation6 + %s74]]
    %s76 = scalar_lea.smem [#allocation8], 4
    %77 = sst [smem:[%s76]] %s75
    %s78 = sld [smem:[#allocation2 + $0x5]]
    %s79 = sld [smem:[#allocation6 + %s78]]
    %s80 = scalar_lea.smem [#allocation7], 5
    %81 = sst [smem:[%s80]] %s79
    %s82 = sadd.s32 %s78, 1000
    %s83 = sld [smem:[#allocation6 + %s82]]
    %s84 = scalar_lea.smem [#allocation8], 5
    %85 = sst [smem:[%s84]] %s83
    %s86 = sld [smem:[#allocation2 + $0x6]]
    %s87 = sld [smem:[#allocation6 + %s86]]
    %s88 = scalar_lea.smem [#allocation7], 6
    %89 = sst [smem:[%s88]] %s87
    %s90 = sadd.s32 %s86, 1000
    %s91 = sld [smem:[#allocation6 + %s90]]
    %s92 = scalar_lea.smem [#allocation8], 6
    %93 = sst [smem:[%s92]] %s91
    %s94 = sld [smem:[#allocation2 + $0x7]]
    %s95 = sld [smem:[#allocation6 + %s94]]
    %s96 = scalar_lea.smem [#allocation7], 7
    %97 = sst [smem:[%s96]] %s95
    %s98 = sadd.s32 %s94, 1000
    %s99 = sld [smem:[#allocation6 + %s98]]
    %s100 = scalar_lea.smem [#allocation8], 7
    %101 = sst [smem:[%s100]] %s99
    // Predicated region
    $region18: #{_ddpm_forward.1} parent=1 // pred_check
      _
    $region19: #{_ddpm_forward.1} parent=1 // pred_check_branch
      %103 = sbr.rel (0) target = $region21
    $region20: #{_ddpm_forward.1} parent=1 // pred_region
      %s105 = ssub.s32 16, 16
      %106 = vsyncadd [#allocation4], %s105
      %109 = dma.smem_to_hbm [#allocation7], 16, %s2, [#allocation4]
    $region21: #{_ddpm_forward.1} parent=1 // pred_fallthru
      _
    // Predicated region
    $region22: #{_ddpm_forward.1} parent=1 // pred_check
      _
    $region23: #{_ddpm_forward.1} parent=1 // pred_check_branch
      %111 = sbr.rel (0) target = $region25
    $region24: #{_ddpm_forward.1} parent=1 // pred_region
      %s113 = ssub.s32 16, 16
      %114 = vsyncadd [#allocation9], %s113
      %117 = dma.smem_to_hbm [#allocation8], 16, %s3, [#allocation9]
    $region25: #{_ddpm_forward.1} parent=1 // pred_fallthru
      _
    // Predicated region
    $region26: #{_ddpm_forward.1} parent=1 // pred_check
      _
    $region27: #{_ddpm_forward.1} parent=1 // pred_check_branch
      %119 = sbr.rel (0) target = $region29
    $region28: #{_ddpm_forward.1} parent=1 // pred_region
      %120 = dma.done [#allocation4], 16
    $region29: #{_ddpm_forward.1} parent=1 // pred_fallthru
      _
    // Predicated region
    $region30: #{_ddpm_forward.1} parent=1 // pred_check
      _
    $region31: #{_ddpm_forward.1} parent=1 // pred_check_branch
      %122 = sbr.rel (0) target = $region33
    $region32: #{_ddpm_forward.1} parent=1 // pred_region
      %123 = dma.done [#allocation9], 16
    $region33: #{_ddpm_forward.1} parent=1 // pred_fallthru
      _
    %124 = sfence
    %125 = vsyncpa [#allocation3], 1
    %126 = vsyncpa [#allocation4], 1
    %127 = vsyncpa [#allocation9], 1
    %128 = vsyncpa [#allocation5], 1

</llo_original>
